<compile_context>
chip_gen: v7x
topology: tpu7x:2x2x1
jax: 0.10.0
libtpu: 0.0.40
codegen_flags: <defaults>
</compile_context>

<pallas_src>
import jax
import jax.numpy as jnp
from jax.experimental import pallas as pl
from jax.experimental.pallas import tpu as pltpu


def _patch_proj_kernel(x_ref, wt_ref, b_ref, cls_ref, pos_ref, out_ref):
    # x_ref  : (TB, n, K)      f32   flattened "patches" for TB batch elements
    # wt_ref : (K, D)          bf16  W^T, resident (constant index_map)
    # b_ref  : (1, D)          f32   bias, resident
    # cls_ref: (TB, 1, D)      f32   cls token rows
    # pos_ref: (TB, n+1, D)    f32   positional embedding rows
    # out_ref: (TB, n+1, D)    f32   final output block
    tb, n, k = x_ref.shape
    d = out_ref.shape[-1]

    # In-kernel f32 -> bf16 cast: rides on idle VPU slots (kernel is HBM-bound).
    x_bf = x_ref[...].astype(jnp.bfloat16).reshape(tb * n, k)
    proj = jnp.dot(x_bf, wt_ref[...], preferred_element_type=jnp.float32)
    proj = proj.reshape(tb, n, d)

    # Row 0: cls token + positional embedding (no matmul contribution).
    out_ref[:, 0:1, :] = (cls_ref[...] + pos_ref[:, 0:1, :]).astype(out_ref.dtype)
    # Rows 1..n: projection + bias + positional embedding, fused into the store.
    out_ref[:, 1:, :] = (proj + b_ref[...] + pos_ref[:, 1:, :]).astype(out_ref.dtype)


def _pick_batch_tile(batch, n_rows, target_rows=1024):
    """Largest divisor of `batch` with <= target_rows patch rows per grid step,
    keeping >= 2 grid steps whenever batch >= 2 (v7x has 2 TensorCores).
    NOTE: for batch == 1 the grid collapses to one step (one v7x TC idle)."""
    best = 1
    for tb in range(1, batch + 1):
        if batch % tb:
            continue
        if tb * n_rows > target_rows and tb > 1:
            break
        if batch // tb >= 2 or batch == 1:
            best = tb
    return best


def linear_patch_projection(x_nchw, weight, bias, x_cls, x_pos,
                            patch_size, out_dim):
    """Pallas implementation of LinearPatchProjection.forward.

    x_nchw : (B, C, H, W) float32
    weight : (out_dim, in_feat)  -- nn.Linear weight (in_feat = p*p*C)
    bias   : (out_dim,)
    x_cls  : (B, 1, out_dim)
    x_pos  : (B, n + 1, out_dim)
    returns: (B, n + 1, out_dim) float32
    """
    B, C, H, W = x_nchw.shape
    p = patch_size
    assert (H * W) % (p * p) == 0, "image area must be divisible by patch area"
    n = (H * W) // (p * p)
    in_feat = p * p * C
    assert weight.shape == (out_dim, in_feat)
    assert x_cls.shape == (B, 1, out_dim)
    assert x_pos.shape == (B, n + 1, out_dim)

    # PyTorch: x.view(-1, n, p*p*c) -- flat reshape of the contiguous NCHW
    # buffer.  Free (layout-preserving) in XLA; x is NOT copied/cast here.
    x3 = jnp.reshape(x_nchw, (B, n, in_feat))

    # Tiny resident operands: W^T in bf16 for the MXU, bias as a (1, D) row.
    # (bias stays a resident kernel block: pos is no longer reshaped/copied in
    #  the wrapper, so folding bias into pos would *add* an HBM pass.)
    wt = jnp.transpose(weight).astype(jnp.bfloat16)            # (K, D)
    b2 = jnp.reshape(bias, (1, out_dim)).astype(jnp.float32)   # (1, D)

    tb = _pick_batch_tile(B, n)
    grid = (B // tb,)

    # Explicit scoped-VMEM budget (v5e defaults to only 16 MiB).
    blk_bytes = (2 * tb * n * in_feat * 4            # x (double-buffered, f32)
                 + 2 * in_feat * out_dim * 2         # W^T (Buffered(1) halves this)
                 + 2 * out_dim * 4                   # bias
                 + 2 * tb * out_dim * 4              # cls
                 + 2 * tb * (n + 1) * out_dim * 4    # pos
                 + 2 * tb * (n + 1) * out_dim * 4)   # out
    vmem_limit = int(min(64 * 2 ** 20, max(32 * 2 ** 20, 2 * blk_bytes)))

    def resident_spec(shape, single_buffer):
        index_map = lambda b: (0,) * len(shape)
        if single_buffer:
            # Constant index_map -> fetched once; no double buffering needed.
            return pl.BlockSpec(shape, index_map, pipeline_mode=pl.Buffered(1))
        return pl.BlockSpec(shape, index_map)

    def build(single_buffer_resident):
        return pl.pallas_call(
            _patch_proj_kernel,
            out_shape=jax.ShapeDtypeStruct((B, n + 1, out_dim), jnp.float32),
            grid_spec=pltpu.PrefetchScalarGridSpec(
                num_scalar_prefetch=0,
                grid=grid,
                in_specs=[
                    pl.BlockSpec((tb, n, in_feat), lambda b: (b, 0, 0)),
                    resident_spec((in_feat, out_dim), single_buffer_resident),
                    resident_spec((1, out_dim), single_buffer_resident),
                    pl.BlockSpec((tb, 1, out_dim), lambda b: (b, 0, 0)),
                    pl.BlockSpec((tb, n + 1, out_dim), lambda b: (b, 0, 0)),
                ],
                out_specs=pl.BlockSpec((tb, n + 1, out_dim), lambda b: (b, 0, 0)),
            ),
            compiler_params=pltpu.CompilerParams(
                dimension_semantics=("parallel",),
                vmem_limit_bytes=vmem_limit),
        )

    args = (x3, wt, b2, x_cls.astype(jnp.float32), x_pos.astype(jnp.float32))
    try:
        return build(True)(*args)
    except Exception:  # pragma: no cover - jax builds without pipeline_mode support
        return build(False)(*args)


if __name__ == "__main__":
    # Small shapes consistent with the module:
    #   batch=2, channels=3, img_size=16, patch_size=4, out_dim=32
    #   => n = 16*16 // (4*4) = 16, in_feat = 4*4*3 = 48
    B, C, IMG, P, OUT = 2, 3, 16, 4, 32
    N = IMG * IMG // (P * P)
    IN_FEAT = P * P * C

    key = jax.random.PRNGKey(0)
    k_x, k_w, k_b, k_cls, k_pos = jax.random.split(key, 5)

    x = jax.random.normal(k_x, (B, C, IMG, IMG), dtype=jnp.float32)
    bound = 1.0 / (IN_FEAT ** 0.5)
    weight = jax.random.uniform(k_w, (OUT, IN_FEAT), jnp.float32, -bound, bound)
    bias = jax.random.uniform(k_b, (OUT,), jnp.float32, -bound, bound)
    # In PyTorch these are fresh randn Parameters each forward; deterministic here.
    x_cls = jax.random.normal(k_cls, (B, 1, OUT), dtype=jnp.float32)
    x_pos = jax.random.normal(k_pos, (B, N + 1, OUT), dtype=jnp.float32)

    out = linear_patch_projection(x, weight, bias, x_cls, x_pos,
                                  patch_size=P, out_dim=OUT)
    out = jax.block_until_ready(out)

    # Reference check in plain JAX with the same bf16-rounded matmul inputs
    # (f32 accumulation), matching the kernel's MXU numerics.
    x_flat = jnp.reshape(x, (B, N, IN_FEAT))
    x_bf = x_flat.astype(jnp.bfloat16).astype(jnp.float32)
    w_bf = weight.astype(jnp.bfloat16).astype(jnp.float32)
    ref_proj = jnp.einsum("bni,oi->bno", x_bf, w_bf,
                          precision=jax.lax.Precision.HIGHEST) + bias
    ref = jnp.concatenate([x_cls, ref_proj], axis=1) + x_pos

    assert out.shape == (B, N + 1, OUT)
    assert jnp.allclose(out, ref, atol=2e-3, rtol=2e-3)

    print("KERNEL_OK")
</pallas_src>

<mosaic_0001>
module attributes {stable_mosaic.version = 11 : i64} {
  func.func @_patch_proj_kernel(%arg0: i32, %arg1: memref<1x16x48xf32, #tpu.memory_space<vmem>>, %arg2: memref<48x32xbf16, #tpu.memory_space<vmem>>, %arg3: memref<1x32xf32, #tpu.memory_space<vmem>>, %arg4: memref<1x1x32xf32, #tpu.memory_space<vmem>>, %arg5: memref<1x17x32xf32, #tpu.memory_space<vmem>>, %arg6: memref<1x17x32xf32, #tpu.memory_space<vmem>>) attributes {dimension_semantics = [#tpu.dimension_semantics<parallel>], iteration_bounds = array<i64: 2>, scalar_prefetch = 0 : i64, scratch_operands = 0 : i64, tpu.core_type = #tpu.core_type<tc>, window_params = [{transform_indices = @transform_0, window_bounds = array<i64: 1, 16, 48>}, {pipeline_mode = #tpu.pipeline_mode<synchronous>, transform_indices = @transform_1, window_bounds = array<i64: 48, 32>}, {pipeline_mode = #tpu.pipeline_mode<synchronous>, transform_indices = @transform_2, window_bounds = array<i64: 1, 32>}, {transform_indices = @transform_3, window_bounds = array<i64: 1, 1, 32>}, {transform_indices = @transform_4, window_bounds = array<i64: 1, 17, 32>}, {transform_indices = @transform_5, window_bounds = array<i64: 1, 17, 32>}]} {
    %c0 = arith.constant 0 : index
    %c0_0 = arith.constant 0 : index
    %c0_1 = arith.constant 0 : index
    %0 = vector.load %arg1[%c0, %c0_0, %c0_1] : memref<1x16x48xf32, #tpu.memory_space<vmem>>, vector<1x16x48xf32>
    %1 = arith.truncf %0 : vector<1x16x48xf32> to vector<1x16x48xbf16>
    %2 = vector.shape_cast %1 : vector<1x16x48xbf16> to vector<16x48xbf16>
    %c0_2 = arith.constant 0 : index
    %c0_3 = arith.constant 0 : index
    %3 = vector.load %arg2[%c0_2, %c0_3] : memref<48x32xbf16, #tpu.memory_space<vmem>>, vector<48x32xbf16>
    %cst = arith.constant dense<0.000000e+00> : vector<16x32xf32>
    %4 = tpu.matmul %2, %3, %cst {dimension_numbers = #tpu.dot_dimension_numbers<[1], [0], [0], [1], [0, 0, 1, 1], [], []>} : vector<16x48xbf16>, vector<48x32xbf16>, vector<16x32xf32> -> vector<16x32xf32>
    %5 = vector.shape_cast %4 : vector<16x32xf32> to vector<1x16x32xf32>
    %c0_4 = arith.constant 0 : index
    %c0_5 = arith.constant 0 : index
    %c0_6 = arith.constant 0 : index
    %6 = vector.load %arg4[%c0_4, %c0_5, %c0_6] : memref<1x1x32xf32, #tpu.memory_space<vmem>>, vector<1x1x32xf32>
    %c0_7 = arith.constant 0 : index
    %c0_8 = arith.constant 0 : index
    %c0_9 = arith.constant 0 : index
    %7 = vector.load %arg5[%c0_7, %c0_8, %c0_9] : memref<1x17x32xf32, #tpu.memory_space<vmem>>, vector<1x1x32xf32>
    %8 = arith.addf %6, %7 : vector<1x1x32xf32>
    %c0_10 = arith.constant 0 : index
    %c0_11 = arith.constant 0 : index
    %c0_12 = arith.constant 0 : index
    %9 = vector.load %arg6[%c0_10, %c0_11, %c0_12] : memref<1x17x32xf32, #tpu.memory_space<vmem>>, vector<1x1x32xf32>
    tpu.vector_store %arg6[%c0_10, %c0_11, %c0_12], %8 {strides = array<i32>} : memref<1x17x32xf32, #tpu.memory_space<vmem>>, vector<1x1x32xf32>,
    %c0_13 = arith.constant 0 : index
    %c0_14 = arith.constant 0 : index
    %10 = vector.load %arg3[%c0_13, %c0_14] : memref<1x32xf32, #tpu.memory_space<vmem>>, vector<1x32xf32>
    %11 = vector.shape_cast %10 : vector<1x32xf32> to vector<1x1x32xf32>
    %12 = vector.broadcast %11 : vector<1x1x32xf32> to vector<1x16x32xf32>
    %13 = arith.addf %5, %12 : vector<1x16x32xf32>
    %c0_15 = arith.constant 0 : index
    %c1 = arith.constant 1 : index
    %c0_16 = arith.constant 0 : index
    %14 = vector.load %arg5[%c0_15, %c1, %c0_16] : memref<1x17x32xf32, #tpu.memory_space<vmem>>, vector<1x16x32xf32>
    %15 = arith.addf %13, %14 : vector<1x16x32xf32>
    %c0_17 = arith.constant 0 : index
    %c1_18 = arith.constant 1 : index
    %c0_19 = arith.constant 0 : index
    %16 = vector.load %arg6[%c0_17, %c1_18, %c0_19] : memref<1x17x32xf32, #tpu.memory_space<vmem>>, vector<1x16x32xf32>
    tpu.vector_store %arg6[%c0_17, %c1_18, %c0_19], %15 {strides = array<i32>} : memref<1x17x32xf32, #tpu.memory_space<vmem>>, vector<1x16x32xf32>,
    return
  }
  func.func @transform_0(%arg0: i32) -> (i32, i32, i32) {
    %c0_i32 = arith.constant 0 : i32
    %c0_i32_0 = arith.constant 0 : i32
    %c0_i32_1 = arith.constant 0 : i32
    return %arg0, %c0_i32, %c0_i32_0 : i32, i32, i32
  }
  func.func @transform_1(%arg0: i32) -> (i32, i32) {
    %c0_i32 = arith.constant 0 : i32
    %c0_i32_0 = arith.constant 0 : i32
    %c0_i32_1 = arith.constant 0 : i32
    return %c0_i32, %c0_i32_0 : i32, i32
  }
  func.func @transform_2(%arg0: i32) -> (i32, i32) {
    %c0_i32 = arith.constant 0 : i32
    %c0_i32_0 = arith.constant 0 : i32
    %c0_i32_1 = arith.constant 0 : i32
    return %c0_i32, %c0_i32_0 : i32, i32
  }
  func.func @transform_3(%arg0: i32) -> (i32, i32, i32) {
    %c0_i32 = arith.constant 0 : i32
    %c0_i32_0 = arith.constant 0 : i32
    %c0_i32_1 = arith.constant 0 : i32
    return %arg0, %c0_i32, %c0_i32_0 : i32, i32, i32
  }
  func.func @transform_4(%arg0: i32) -> (i32, i32, i32) {
    %c0_i32 = arith.constant 0 : i32
    %c0_i32_0 = arith.constant 0 : i32
    %c0_i32_1 = arith.constant 0 : i32
    return %arg0, %c0_i32, %c0_i32_0 : i32, i32, i32
  }
  func.func @transform_5(%arg0: i32) -> (i32, i32, i32) {
    %c0_i32 = arith.constant 0 : i32
    %c0_i32_0 = arith.constant 0 : i32
    %c0_i32_1 = arith.constant 0 : i32
    return %arg0, %c0_i32, %c0_i32_0 : i32, i32, i32
  }
}

module attributes {stable_mosaic.version = 11 : i64} {
  func.func @_patch_proj_kernel(%arg0: i32, %arg1: memref<1x16x48xf32, #tpu.memory_space<vmem>>, %arg2: memref<48x32xbf16, #tpu.memory_space<vmem>>, %arg3: memref<1x32xf32, #tpu.memory_space<vmem>>, %arg4: memref<1x1x32xf32, #tpu.memory_space<vmem>>, %arg5: memref<1x17x32xf32, #tpu.memory_space<vmem>>, %arg6: memref<1x17x32xf32, #tpu.memory_space<vmem>>) attributes {dimension_semantics = [#tpu.dimension_semantics<parallel>], iteration_bounds = array<i64: 2>, scalar_prefetch = 0 : i64, scratch_operands = 0 : i64, tpu.core_type = #tpu.core_type<tc>, window_params = [{transform_indices = @transform_0, window_bounds = array<i64: 1, 16, 48>}, {pipeline_mode = #tpu.pipeline_mode<synchronous>, transform_indices = @transform_1, window_bounds = array<i64: 48, 32>}, {pipeline_mode = #tpu.pipeline_mode<synchronous>, transform_indices = @transform_2, window_bounds = array<i64: 1, 32>}, {transform_indices = @transform_3, window_bounds = array<i64: 1, 1, 32>}, {transform_indices = @transform_4, window_bounds = array<i64: 1, 17, 32>}, {transform_indices = @transform_5, window_bounds = array<i64: 1, 17, 32>}]} {
    %c0 = arith.constant 0 : index
    %c0_0 = arith.constant 0 : index
    %c0_1 = arith.constant 0 : index
    %0 = vector.load %arg1[%c0, %c0_0, %c0_1] : memref<1x16x48xf32, #tpu.memory_space<vmem>>, vector<1x16x48xf32>
    %1 = arith.truncf %0 : vector<1x16x48xf32> to vector<1x16x48xbf16>
    %2 = vector.shape_cast %1 : vector<1x16x48xbf16> to vector<16x48xbf16>
    %c0_2 = arith.constant 0 : index
    %c0_3 = arith.constant 0 : index
    %3 = vector.load %arg2[%c0_2, %c0_3] : memref<48x32xbf16, #tpu.memory_space<vmem>>, vector<48x32xbf16>
    %cst = arith.constant dense<0.000000e+00> : vector<16x32xf32>
    %4 = tpu.matmul %2, %3, %cst {dimension_numbers = #tpu.dot_dimension_numbers<[1], [0], [0], [1], [0, 0, 1, 1], [], []>} : vector<16x48xbf16>, vector<48x32xbf16>, vector<16x32xf32> -> vector<16x32xf32>
    %5 = vector.shape_cast %4 : vector<16x32xf32> to vector<1x16x32xf32>
    %c0_4 = arith.constant 0 : index
    %c0_5 = arith.constant 0 : index
    %c0_6 = arith.constant 0 : index
    %6 = vector.load %arg4[%c0_4, %c0_5, %c0_6] : memref<1x1x32xf32, #tpu.memory_space<vmem>>, vector<1x1x32xf32>
    %c0_7 = arith.constant 0 : index
    %c0_8 = arith.constant 0 : index
    %c0_9 = arith.constant 0 : index
    %7 = vector.load %arg5[%c0_7, %c0_8, %c0_9] : memref<1x17x32xf32, #tpu.memory_space<vmem>>, vector<1x1x32xf32>
    %8 = arith.addf %6, %7 : vector<1x1x32xf32>
    %c0_10 = arith.constant 0 : index
    %c0_11 = arith.constant 0 : index
    %c0_12 = arith.constant 0 : index
    %9 = vector.load %arg6[%c0_10, %c0_11, %c0_12] : memref<1x17x32xf32, #tpu.memory_space<vmem>>, vector<1x1x32xf32>
    tpu.vector_store %arg6[%c0_10, %c0_11, %c0_12], %8 {strides = array<i32>} : memref<1x17x32xf32, #tpu.memory_space<vmem>>, vector<1x1x32xf32>,
    %c0_13 = arith.constant 0 : index
    %c0_14 = arith.constant 0 : index
    %10 = vector.load %arg3[%c0_13, %c0_14] : memref<1x32xf32, #tpu.memory_space<vmem>>, vector<1x32xf32>
    %11 = vector.shape_cast %10 : vector<1x32xf32> to vector<1x1x32xf32>
    %12 = vector.broadcast %11 : vector<1x1x32xf32> to vector<1x16x32xf32>
    %13 = arith.addf %5, %12 : vector<1x16x32xf32>
    %c0_15 = arith.constant 0 : index
    %c1 = arith.constant 1 : index
    %c0_16 = arith.constant 0 : index
    %14 = vector.load %arg5[%c0_15, %c1, %c0_16] : memref<1x17x32xf32, #tpu.memory_space<vmem>>, vector<1x16x32xf32>
    %15 = arith.addf %13, %14 : vector<1x16x32xf32>
    %c0_17 = arith.constant 0 : index
    %c1_18 = arith.constant 1 : index
    %c0_19 = arith.constant 0 : index
    %16 = vector.load %arg6[%c0_17, %c1_18, %c0_19] : memref<1x17x32xf32, #tpu.memory_space<vmem>>, vector<1x16x32xf32>
    tpu.vector_store %arg6[%c0_17, %c1_18, %c0_19], %15 {strides = array<i32>} : memref<1x17x32xf32, #tpu.memory_space<vmem>>, vector<1x16x32xf32>,
    return
  }
  func.func @transform_0(%arg0: i32) -> (i32, i32, i32) {
    %c0_i32 = arith.constant 0 : i32
    %c0_i32_0 = arith.constant 0 : i32
    %c0_i32_1 = arith.constant 0 : i32
    return %arg0, %c0_i32, %c0_i32_0 : i32, i32, i32
  }
  func.func @transform_1(%arg0: i32) -> (i32, i32) {
    %c0_i32 = arith.constant 0 : i32
    %c0_i32_0 = arith.constant 0 : i32
    %c0_i32_1 = arith.constant 0 : i32
    return %c0_i32, %c0_i32_0 : i32, i32
  }
  func.func @transform_2(%arg0: i32) -> (i32, i32) {
    %c0_i32 = arith.constant 0 : i32
    %c0_i32_0 = arith.constant 0 : i32
    %c0_i32_1 = arith.constant 0 : i32
    return %c0_i32, %c0_i32_0 : i32, i32
  }
  func.func @transform_3(%arg0: i32) -> (i32, i32, i32) {
    %c0_i32 = arith.constant 0 : i32
    %c0_i32_0 = arith.constant 0 : i32
    %c0_i32_1 = arith.constant 0 : i32
    return %arg0, %c0_i32, %c0_i32_0 : i32, i32, i32
  }
  func.func @transform_4(%arg0: i32) -> (i32, i32, i32) {
    %c0_i32 = arith.constant 0 : i32
    %c0_i32_0 = arith.constant 0 : i32
    %c0_i32_1 = arith.constant 0 : i32
    return %arg0, %c0_i32, %c0_i32_0 : i32, i32, i32
  }
  func.func @transform_5(%arg0: i32) -> (i32, i32, i32) {
    %c0_i32 = arith.constant 0 : i32
    %c0_i32_0 = arith.constant 0 : i32
    %c0_i32_1 = arith.constant 0 : i32
    return %arg0, %c0_i32, %c0_i32_0 : i32, i32, i32
  }
}

</mosaic_0001>

<llo_original>
// kernel: tpu_custom_call.1
$region0: #{tpu_custom_call.1}
  #allocation0 [shape = 'u32[]', space=smem, size = 0x4, offset = 0x4, fixed_abs, tag = 'smem constant byte address 0x4 - core index']
  #allocation1 [shape = 'u32[144,128]{1,0:T(1,128)}', space=vmem, size = 0x12000, scoped, tag = 'internal scratch']
  %s0 = inlined_call_operand.vmem [shape: f32[2,16,48], index: 0, kind: input, shape index: {}]
  %s1 = inlined_call_operand.vmem [shape: bf16[48,32], index: 1, kind: input, shape index: {}]
  %s2 = inlined_call_operand.vmem [shape: f32[1,32], index: 2, kind: input, shape index: {}]
  %s3 = inlined_call_operand.vmem [shape: f32[2,1,32], index: 3, kind: input, shape index: {}]
  %s4 = inlined_call_operand.vmem [shape: f32[2,17,32], index: 4, kind: input, shape index: {}]
  %s5 = inlined_call_operand.vmem [shape: f32[2,17,32], index: 5, kind: output, shape index: {}]
  %s6 = sld [smem:[#allocation0]]
  $region53: #{tpu_custom_call.1} parent=0
    _
  %s8 = ssub.s32 1, %s6
  %s9 = scalar_select 0, %s8, %s6
  loop: start=0, step=1, limit=4
  $region2: #{tpu_custom_call.1} parent=0 // loop_pre_header
    _
  $region3: #{tpu_custom_call.1} parent=0 // loop_header
    %s11 = sphi 0, %s15
    %p12 = scmp.ge.s32.totalorder %s11, 4
    %s21 = sphi 0, %s23
    %s24 = sphi 0, %s21
    %s25 = sphi 0, %s24
    %s41 = sphi 0, %s25
    %s45 = sphi 0, %s45
    %s47 = sphi 0, %s45
    %s48 = sphi 0, %s47
    %s62 = sphi 0, %s48
    %s66 = sphi 0, %s66
    %s68 = sphi 0, %s66
    %s69 = sphi 0, %s68
    %s83 = sphi 0, %s69
    %s89 = sphi 0, %s91
    %s92 = sphi 0, %s89
    %s93 = sphi 0, %s92
    %s109 = sphi 0, %s93
    %s115 = sphi 0, %s117
    %s118 = sphi 0, %s115
    %s119 = sphi 0, %s118
    %s135 = sphi 0, %s119
    %s141 = sphi 0, %s143
    %s144 = sphi 0, %s141
    %s145 = sphi 0, %s144
    %s161 = sphi 0, %s145
  $region4: #{tpu_custom_call.1} parent=0 // loop_header_branch
    %14 = sbr.rel (%p12) target = $region8
  $region5: #{tpu_custom_call.1} parent=0 // loop_body
    %s16 = ssub.s32 %s11, 1
    %s17 = ssub.s32 %s11, 2
    %s18 = sadd.s32 %s11, 1
    %s19 = ssub.s32 %s11, %s18
    %p20 = scmp.eq.s32.totalorder %s19, 0
    %s22 = sadd.s32 %s21, 1
    %s23 = scalar_select %p20, %s21, %s22
    %p26 = pneg %p20
    %p27 = scmp.eq.s32.totalorder %s11, 1
    %p28 = por %p26, %p27
    %p29 = scmp.ne.s32.totalorder %s21, %s24
    %p30 = scmp.eq.s32.totalorder %s11, 0
    %p31 = por %p29, %p30
    %p32 = scmp.ne.s32.totalorder %s21, %s24
    %p33 = scmp.eq.s32.totalorder %s16, 1
    %p34 = por %p32, %p33
    %p35 = scmp.ne.s32.totalorder %s24, %s25
    %p36 = scmp.eq.s32.totalorder %s16, 0
    %p37 = por %p35, %p36
    %p38 = scmp.ne.s32.totalorder %s24, %s25
    %p39 = scmp.eq.s32.totalorder %s17, 1
    %p40 = por %p38, %p39
    %p42 = scmp.ne.s32.totalorder %s25, %s41
    %p43 = scmp.eq.s32.totalorder %s17, 0
    %p44 = por %p42, %p43
    %s46 = sadd.s32 %s45, 1
    %p49 = scmp.eq.s32.totalorder %s11, 1
    %p50 = scmp.ne.s32.totalorder %s45, %s47
    %p51 = scmp.eq.s32.totalorder %s11, 0
    %p52 = por %p50, %p51
    %p53 = scmp.ne.s32.totalorder %s45, %s47
    %p54 = scmp.eq.s32.totalorder %s16, 1
    %p55 = por %p53, %p54
    %p56 = scmp.ne.s32.totalorder %s47, %s48
    %p57 = scmp.eq.s32.totalorder %s16, 0
    %p58 = por %p56, %p57
    %p59 = scmp.ne.s32.totalorder %s47, %s48
    %p60 = scmp.eq.s32.totalorder %s17, 1
    %p61 = por %p59, %p60
    %p63 = scmp.ne.s32.totalorder %s48, %s62
    %p64 = scmp.eq.s32.totalorder %s17, 0
    %p65 = por %p63, %p64
    %s67 = sadd.s32 %s66, 1
    %p70 = scmp.eq.s32.totalorder %s11, 1
    %p71 = scmp.ne.s32.totalorder %s66, %s68
    %p72 = scmp.eq.s32.totalorder %s11, 0
    %p73 = por %p71, %p72
    %p74 = scmp.ne.s32.totalorder %s66, %s68
    %p75 = scmp.eq.s32.totalorder %s16, 1
    %p76 = por %p74, %p75
    %p77 = scmp.ne.s32.totalorder %s68, %s69
    %p78 = scmp.eq.s32.totalorder %s16, 0
    %p79 = por %p77, %p78
    %p80 = scmp.ne.s32.totalorder %s68, %s69
    %p81 = scmp.eq.s32.totalorder %s17, 1
    %p82 = por %p80, %p81
    %p84 = scmp.ne.s32.totalorder %s69, %s83
    %p85 = scmp.eq.s32.totalorder %s17, 0
    %p86 = por %p84, %p85
    %s87 = ssub.s32 %s11, %s18
    %p88 = scmp.eq.s32.totalorder %s87, 0
    %s90 = sadd.s32 %s89, 1
    %s91 = scalar_select %p88, %s89, %s90
    %p94 = pneg %p88
    %p95 = scmp.eq.s32.totalorder %s11, 1
    %p96 = por %p94, %p95
    %p97 = scmp.ne.s32.totalorder %s89, %s92
    %p98 = scmp.eq.s32.totalorder %s11, 0
    %p99 = por %p97, %p98
    %p100 = scmp.ne.s32.totalorder %s89, %s92
    %p101 = scmp.eq.s32.totalorder %s16, 1
    %p102 = por %p100, %p101
    %p103 = scmp.ne.s32.totalorder %s92, %s93
    %p104 = scmp.eq.s32.totalorder %s16, 0
    %p105 = por %p103, %p104
    %p106 = scmp.ne.s32.totalorder %s92, %s93
    %p107 = scmp.eq.s32.totalorder %s17, 1
    %p108 = por %p106, %p107
    %p110 = scmp.ne.s32.totalorder %s93, %s109
    %p111 = scmp.eq.s32.totalorder %s17, 0
    %p112 = por %p110, %p111
    %s113 = ssub.s32 %s11, %s18
    %p114 = scmp.eq.s32.totalorder %s113, 0
    %s116 = sadd.s32 %s115, 1
    %s117 = scalar_select %p114, %s115, %s116
    %p120 = pneg %p114
    %p121 = scmp.eq.s32.totalorder %s11, 1
    %p122 = por %p120, %p121
    %p123 = scmp.ne.s32.totalorder %s115, %s118
    %p124 = scmp.eq.s32.totalorder %s11, 0
    %p125 = por %p123, %p124
    %p126 = scmp.ne.s32.totalorder %s115, %s118
    %p127 = scmp.eq.s32.totalorder %s16, 1
    %p128 = por %p126, %p127
    %p129 = scmp.ne.s32.totalorder %s118, %s119
    %p130 = scmp.eq.s32.totalorder %s16, 0
    %p131 = por %p129, %p130
    %p132 = scmp.ne.s32.totalorder %s118, %s119
    %p133 = scmp.eq.s32.totalorder %s17, 1
    %p134 = por %p132, %p133
    %p136 = scmp.ne.s32.totalorder %s119, %s135
    %p137 = scmp.eq.s32.totalorder %s17, 0
    %p138 = por %p136, %p137
    %s139 = ssub.s32 %s11, %s18
    %p140 = scmp.eq.s32.totalorder %s139, 0
    %s142 = sadd.s32 %s141, 1
    %s143 = scalar_select %p140, %s141, %s142
    %p146 = pneg %p140
    %p147 = scmp.eq.s32.totalorder %s11, 1
    %p148 = por %p146, %p147
    %p149 = scmp.ne.s32.totalorder %s141, %s144
    %p150 = scmp.eq.s32.totalorder %s11, 0
    %p151 = por %p149, %p150
    %p152 = scmp.ne.s32.totalorder %s141, %s144
    %p153 = scmp.eq.s32.totalorder %s16, 1
    %p154 = por %p152, %p153
    %p155 = scmp.ne.s32.totalorder %s144, %s145
    %p156 = scmp.eq.s32.totalorder %s16, 0
    %p157 = por %p155, %p156
    %p158 = scmp.ne.s32.totalorder %s144, %s145
    %p159 = scmp.eq.s32.totalorder %s17, 1
    %p160 = por %p158, %p159
    %p162 = scmp.ne.s32.totalorder %s145, %s161
    %p163 = scmp.eq.s32.totalorder %s17, 0
    %p164 = por %p162, %p163
    %p165 = scmp.le.s32.totalorder 1, %s11
    %p166 = scmp.lt.s32.totalorder %s11, 3
    %p167 = pnand %p165, %p166
    %p168 = pneg %p167
    // Predicated region
    $region9: #{tpu_custom_call.1} parent=5 // pred_check
      _
    $region10: #{tpu_custom_call.1} parent=5 // pred_check_branch
      %170 = sbr.rel (%p167) target = $region12
    $region11: #{tpu_custom_call.1} parent=5 // pred_region
      %s171 = ssub.s32 %s11, 1
      // Predicated region
      $region13: #{tpu_custom_call.1} parent=11 // pred_check
        %p172 = pneg %p58
      $region14: #{tpu_custom_call.1} parent=11 // pred_check_branch
        %174 = sbr.rel (%p172) target = $region16
      $region15: #{tpu_custom_call.1} parent=11 // pred_region
        _
      $region16: #{tpu_custom_call.1} parent=11 // pred_fallthru
        _
      // Predicated region
      $region17: #{tpu_custom_call.1} parent=11 // pred_check
        %p175 = pneg %p79
      $region18: #{tpu_custom_call.1} parent=11 // pred_check_branch
        %177 = sbr.rel (%p175) target = $region20
      $region19: #{tpu_custom_call.1} parent=11 // pred_region
        _
      $region20: #{tpu_custom_call.1} parent=11 // pred_fallthru
        _
    $region12: #{tpu_custom_call.1} parent=5 // pred_fallthru
      _
    %p178 = scmp.lt.s32.totalorder %s11, 2
    // Predicated region
    $region21: #{tpu_custom_call.1} parent=5 // pred_check
      %p179 = pneg %p178
    $region22: #{tpu_custom_call.1} parent=5 // pred_check_branch
      %181 = sbr.rel (%p179) target = $region24
    $region23: #{tpu_custom_call.1} parent=5 // pred_region
      // Predicated region
      $region25: #{tpu_custom_call.1} parent=23 // pred_check
        %p182 = pneg %p31
      $region26: #{tpu_custom_call.1} parent=23 // pred_check_branch
        %184 = sbr.rel (%p182) target = $region28
      $region27: #{tpu_custom_call.1} parent=23 // pred_region
        %p185 = scmp.lt.s32.totalorder %s11, 1
        %s186 = scalar_select %p185, %s11, 1
        %s187 = smul.addr %s186, 2
        %s188 = smul.addr %s187, 8
        %s189 = scalar_lea.vmem %s0, %s188
      $region28: #{tpu_custom_call.1} parent=23 // pred_fallthru
        _
      // Predicated region
      $region29: #{tpu_custom_call.1} parent=23 // pred_check
        %p190 = pneg %p99
      $region30: #{tpu_custom_call.1} parent=23 // pred_check_branch
        %192 = sbr.rel (%p190) target = $region32
      $region31: #{tpu_custom_call.1} parent=23 // pred_region
        %p193 = scmp.lt.s32.totalorder %s11, 1
        %s194 = scalar_select %p193, %s11, 1
        %s195 = scalar_lea.vmem %s3, %s194
      $region32: #{tpu_custom_call.1} parent=23 // pred_fallthru
        _
      // Predicated region
      $region33: #{tpu_custom_call.1} parent=23 // pred_check
        %p196 = pneg %p125
      $region34: #{tpu_custom_call.1} parent=23 // pred_check_branch
        %198 = sbr.rel (%p196) target = $region36
      $region35: #{tpu_custom_call.1} parent=23 // pred_region
        %p199 = scmp.lt.s32.totalorder %s11, 1
        %s200 = scalar_select %p199, %s11, 1
        %s201 = smul.addr %s200, 3
        %s202 = smul.addr %s201, 8
        %s203 = scalar_lea.vmem %s4, %s202
      $region36: #{tpu_custom_call.1} parent=23 // pred_fallthru
        _
    $region24: #{tpu_custom_call.1} parent=5 // pred_fallthru
      _
    %p204 = scmp.le.s32.totalorder 1, %s11
    %p205 = scmp.lt.s32.totalorder %s11, 3
    %p206 = pnand %p204, %p205
    %p207 = pneg %p206
    // Predicated region
    $region37: #{tpu_custom_call.1} parent=5 // pred_check
      _
    $region38: #{tpu_custom_call.1} parent=5 // pred_check_branch
      %209 = sbr.rel (%p206) target = $region40
    $region39: #{tpu_custom_call.1} parent=5 // pred_region
      %s210 = ssub.s32 %s11, 1
      %p211 = scmp.lt.s32.totalorder %s16, 1
      %s212 = scalar_select %p211, %s16, 1
      %s213 = smul.addr %s212, 2
      %s214 = smul.addr %s213, 8
      %s215 = scalar_lea.vmem %s0, %s214
      %p216 = pneg %p37
      %p217 = pneg %p34
      %p218 = pneg %p58
      %p219 = pneg %p55
      %p220 = pneg %p79
      %p221 = pneg %p76
      %p222 = scmp.lt.s32.totalorder %s16, 1
      %s223 = scalar_select %p222, %s16, 1
      %s224 = scalar_lea.vmem %s3, %s223
      %p225 = pneg %p105
      %p226 = pneg %p102
      %p227 = scmp.lt.s32.totalorder %s16, 1
      %s228 = scalar_select %p227, %s16, 1
      %s229 = smul.addr %s228, 3
      %s230 = smul.addr %s229, 8
      %s231 = scalar_lea.vmem %s4, %s230
      %p232 = pneg %p131
      %p233 = pneg %p128
      %p234 = pneg %p157
      %p235 = pneg %p154
      %p236 = scmp.lt.s32.totalorder %s16, 1
      %s237 = scalar_select %p236, %s16, 1
      %s238 = smul.addr %s237, 3
      %s239 = smul.addr %s238, 8
      %s240 = scalar_lea.vmem %s5, %s239
      %p241 = scmp.lt.s32.totalorder %s16, 1
      %s242 = scalar_select %p241, %s16, 1
      %s243 = smul.addr %s242, 2
      %s244 = smul.addr %s243, 8
      %s245 = scalar_lea.vmem %s0, %s244
      %p246 = scmp.lt.s32.totalorder %s16, 1
      %s247 = scalar_select %p246, %s16, 1
      %s248 = scalar_lea.vmem %s3, %s247
      %p249 = scmp.lt.s32.totalorder %s16, 1
      %s250 = scalar_select %p249, %s16, 1
      %s251 = smul.addr %s250, 3
      %s252 = smul.addr %s251, 8
      %s253 = scalar_lea.vmem %s4, %s252
      %p254 = scmp.lt.s32.totalorder %s16, 1
      %s255 = scalar_select %p254, %s16, 1
      %s256 = smul.addr %s255, 3
      %s257 = smul.addr %s256, 8
      %s258 = scalar_lea.vmem %s5, %s257
      %v260 = vld [vmem:[%s245] sm:$0xff]
      %v261 = vld [vmem:[%s245 + $0x8] sm:$0xff]
      %v262 = vpack.c.bf16 %v261, %v260
      %v263 = vld [vmem:[%s1] sm:$0xf]
      %v264 = vld [vmem:[%s1 + $0x4] sm:$0xf]
      %v265 = vld [vmem:[%s1 + $0x8] sm:$0xf]
      %v266 = vld [vmem:[%s1 + $0xc] sm:$0xf]
      %v267 = vld [vmem:[%s1 + $0x10] sm:$0xf]
      %v268 = vld [vmem:[%s1 + $0x14] sm:$0xf]
      %v275 = vunpack.c.l.b16 %v263
      %v276 = vunpack.c.l.b16 %v264
      %v277 = vunpack.c.l.b16 %v265
      %v278 = vunpack.c.l.b16 %v266
      %v279 = vunpack.c.l.b16 %v267
      %v280 = vunpack.c.l.b16 %v268
      %v281 = vpack.c.b16 %v276, %v275
      %v282 = vpack.c.b16 %v278, %v277
      %v283 = vpack.c.b16 %v280, %v279
      %vm287 = vcmask 392192
      %v289 = vsel %vm287, %v262, 0
      %291 = vmatprep.subr.bf16.mxu0 0
      %292 = vmatpush1.bf16.msra.mxu0 %v281
      %293 = vmatprep.subr.bf16.mxu0 0
      %294 = vmatpush1.bf16.msra.mxu0 %v282
      %295 = vmatprep.subr.bf16.mxu0 0
      %296 = vmatpush1.bf16.msra.mxu0 %v283
      %297 = vmatprep.subr.bf16.mxu0 0
      %298 = vmatpush1.bf16.msra.mxu0 0
      %299 = vmatprep.subr.bf16.mxu0 0
      %300 = vmatpush1.bf16.msra.mxu0 0
      %301 = vmatprep.subr.bf16.mxu0 0
      %302 = vmatpush1.bf16.msra.mxu0 0
      %303 = vmatprep.subr.bf16.mxu0 0
      %304 = vmatpush1.bf16.msra.mxu0 0
      %305 = vmatprep.subr.bf16.mxu0 0
      %306 = vmatpush1.bf16.msra.mxu0 0
      %307 = vmatprep.subr.bf16.mxu0 0
      %308 = vmatpush1.bf16.msra.mxu0 0
      %309 = vmatprep.subr.bf16.mxu0 0
      %310 = vmatpush1.bf16.msra.mxu0 0
      %311 = vmatprep.subr.bf16.mxu0 0
      %312 = vmatpush1.bf16.msra.mxu0 0
      %313 = vmatprep.subr.bf16.mxu0 0
      %314 = vmatpush1.bf16.msra.mxu0 0
      %315 = vmatprep.subr.bf16.mxu0 0
      %316 = vmatpush1.bf16.msra.mxu0 0
      %317 = vmatprep.subr.bf16.mxu0 0
      %318 = vmatpush1.bf16.msra.mxu0 0
      %319 = vmatprep.subr.bf16.mxu0 0
      %320 = vmatpush1.bf16.msra.mxu0 0
      %321 = vmatprep.subr.bf16.mxu0 0
      %322 = vmatpush1.bf16.msra.mxu0 0
      %323 = vmatprep.mubr.bf16.mxu0 0
      %324 = vmatmul.mubr.bf16.gmra.mrb[0].mxu0 %v289
      %v325 = vpop.f32.mrb[0].mxu0
      %v326 = vadd.f32 0.0, %v325
      %v327 = vpop.f32.mrb[0].mxu0
      %v328 = vpop.f32.mrb[0].mxu0
      %v329 = vadd.f32 0.0, %v328
      %v330 = vpop.f32.mrb[0].mxu0
      %331 = vdwg.mxu0
      %v332 = vld [vmem:[%s248] sm:$0x1]
      %v333 = vld [vmem:[%s253] sm:$0x1]
      %v334 = vadd.f32 %v332, %v333
      %vm335 = vcmask 253952
      %336 = vst.msk [vmem:[%s258] sm:$0x1] %vm335, %v334
      %v337 = vld [vmem:[%s2] sm:$0x1]
      %v339 = vlaneseq
      %v340 = vshrl.u32 %v339, 7
      %v341 = vsub.s32 0, %v340
      %v342 = vrot.slane %v337, %v341
      %v344 = vadd.f32 %v326, %v342
      %v345 = vadd.f32 %v329, %v342
      %v346 = vld [vmem:[%s253 + $0x1] sm:$0xff]
      %v347 = vld [vmem:[%s253 + $0x9] sm:$0xff]
      %v348 = vadd.f32 %v344, %v346
      %v349 = vadd.f32 %v345, %v347
      %vm350 = vcmask 261120
      %351 = vst.msk [vmem:[%s258 + $0x1] sm:$0xff] %vm350, %v348
      %352 = vst.msk [vmem:[%s258 + $0x9] sm:$0xff] %vm350, %v349
      %p353 = scmp.lt.s32.totalorder %s16, 1
      %s354 = scalar_select %p353, %s16, 1
      %s355 = smul.addr %s354, 3
      %s356 = smul.addr %s355, 8
      %s357 = scalar_lea.vmem %s5, %s356
      // Predicated region
      $region41: #{tpu_custom_call.1} parent=39 // pred_check
        %p358 = pneg %p154
      $region42: #{tpu_custom_call.1} parent=39 // pred_check_branch
        %360 = sbr.rel (%p358) target = $region44
      $region43: #{tpu_custom_call.1} parent=39 // pred_region
        _
      $region44: #{tpu_custom_call.1} parent=39 // pred_fallthru
        _
    $region40: #{tpu_custom_call.1} parent=5 // pred_fallthru
      _
    %p361 = scmp.le.s32.totalorder 2, %s11
    // Predicated region
    $region45: #{tpu_custom_call.1} parent=5 // pred_check
      %p362 = pneg %p361
    $region46: #{tpu_custom_call.1} parent=5 // pred_check_branch
      %364 = sbr.rel (%p362) target = $region48
    $region47: #{tpu_custom_call.1} parent=5 // pred_region
      %s365 = ssub.s32 %s11, 2
      // Predicated region
      $region49: #{tpu_custom_call.1} parent=47 // pred_check
        %p366 = pneg %p160
      $region50: #{tpu_custom_call.1} parent=47 // pred_check_branch
        %368 = sbr.rel (%p366) target = $region52
      $region51: #{tpu_custom_call.1} parent=47 // pred_region
        %p369 = scmp.lt.s32.totalorder %s17, 1
        %s370 = scalar_select %p369, %s17, 1
        %s371 = smul.addr %s370, 3
        %s372 = smul.addr %s371, 8
        %s373 = scalar_lea.vmem %s5, %s372
      $region52: #{tpu_custom_call.1} parent=47 // pred_fallthru
        _
    $region48: #{tpu_custom_call.1} parent=5 // pred_fallthru
      _
  $region6: #{tpu_custom_call.1} parent=0 // loop_footer
    %s15 = sadd.s32 1, %s11
  $region7: #{tpu_custom_call.1} parent=0 // loop_footer_branch
    %10 = sbr.rel target = $region3
  $region8: #{tpu_custom_call.1} parent=0 // loop_exit
    _

// kernel: tpu_custom_call.1
$region0: #{tpu_custom_call.1}
  #allocation0 [shape = 'u32[]', space=smem, size = 0x4, offset = 0x4, fixed_abs, tag = 'smem constant byte address 0x4 - core index']
  #allocation1 [shape = 'u32[144,128]{1,0:T(1,128)}', space=vmem, size = 0x12000, scoped, tag = 'internal scratch']
  %s0 = inlined_call_operand.vmem [shape: f32[2,16,48], index: 0, kind: input, shape index: {}]
  %s1 = inlined_call_operand.vmem [shape: bf16[48,32], index: 1, kind: input, shape index: {}]
  %s2 = inlined_call_operand.vmem [shape: f32[1,32], index: 2, kind: input, shape index: {}]
  %s3 = inlined_call_operand.vmem [shape: f32[2,1,32], index: 3, kind: input, shape index: {}]
  %s4 = inlined_call_operand.vmem [shape: f32[2,17,32], index: 4, kind: input, shape index: {}]
  %s5 = inlined_call_operand.vmem [shape: f32[2,17,32], index: 5, kind: output, shape index: {}]
  %s6 = sld [smem:[#allocation0]]
  $region53: #{tpu_custom_call.1} parent=0
    _
  %s8 = ssub.s32 1, %s6
  %s9 = scalar_select 0, %s8, %s6
  loop: start=0, step=1, limit=4
  $region2: #{tpu_custom_call.1} parent=0 // loop_pre_header
    _
  $region3: #{tpu_custom_call.1} parent=0 // loop_header
    %s11 = sphi 0, %s15
    %p12 = scmp.ge.s32.totalorder %s11, 4
    %s21 = sphi 0, %s23
    %s24 = sphi 0, %s21
    %s25 = sphi 0, %s24
    %s41 = sphi 0, %s25
    %s45 = sphi 0, %s45
    %s47 = sphi 0, %s45
    %s48 = sphi 0, %s47
    %s62 = sphi 0, %s48
    %s66 = sphi 0, %s66
    %s68 = sphi 0, %s66
    %s69 = sphi 0, %s68
    %s83 = sphi 0, %s69
    %s89 = sphi 0, %s91
    %s92 = sphi 0, %s89
    %s93 = sphi 0, %s92
    %s109 = sphi 0, %s93
    %s115 = sphi 0, %s117
    %s118 = sphi 0, %s115
    %s119 = sphi 0, %s118
    %s135 = sphi 0, %s119
    %s141 = sphi 0, %s143
    %s144 = sphi 0, %s141
    %s145 = sphi 0, %s144
    %s161 = sphi 0, %s145
  $region4: #{tpu_custom_call.1} parent=0 // loop_header_branch
    %14 = sbr.rel (%p12) target = $region8
  $region5: #{tpu_custom_call.1} parent=0 // loop_body
    %s16 = ssub.s32 %s11, 1
    %s17 = ssub.s32 %s11, 2
    %s18 = sadd.s32 %s11, 1
    %s19 = ssub.s32 %s11, %s18
    %p20 = scmp.eq.s32.totalorder %s19, 0
    %s22 = sadd.s32 %s21, 1
    %s23 = scalar_select %p20, %s21, %s22
    %p26 = pneg %p20
    %p27 = scmp.eq.s32.totalorder %s11, 1
    %p28 = por %p26, %p27
    %p29 = scmp.ne.s32.totalorder %s21, %s24
    %p30 = scmp.eq.s32.totalorder %s11, 0
    %p31 = por %p29, %p30
    %p32 = scmp.ne.s32.totalorder %s21, %s24
    %p33 = scmp.eq.s32.totalorder %s16, 1
    %p34 = por %p32, %p33
    %p35 = scmp.ne.s32.totalorder %s24, %s25
    %p36 = scmp.eq.s32.totalorder %s16, 0
    %p37 = por %p35, %p36
    %p38 = scmp.ne.s32.totalorder %s24, %s25
    %p39 = scmp.eq.s32.totalorder %s17, 1
    %p40 = por %p38, %p39
    %p42 = scmp.ne.s32.totalorder %s25, %s41
    %p43 = scmp.eq.s32.totalorder %s17, 0
    %p44 = por %p42, %p43
    %s46 = sadd.s32 %s45, 1
    %p49 = scmp.eq.s32.totalorder %s11, 1
    %p50 = scmp.ne.s32.totalorder %s45, %s47
    %p51 = scmp.eq.s32.totalorder %s11, 0
    %p52 = por %p50, %p51
    %p53 = scmp.ne.s32.totalorder %s45, %s47
    %p54 = scmp.eq.s32.totalorder %s16, 1
    %p55 = por %p53, %p54
    %p56 = scmp.ne.s32.totalorder %s47, %s48
    %p57 = scmp.eq.s32.totalorder %s16, 0
    %p58 = por %p56, %p57
    %p59 = scmp.ne.s32.totalorder %s47, %s48
    %p60 = scmp.eq.s32.totalorder %s17, 1
    %p61 = por %p59, %p60
    %p63 = scmp.ne.s32.totalorder %s48, %s62
    %p64 = scmp.eq.s32.totalorder %s17, 0
    %p65 = por %p63, %p64
    %s67 = sadd.s32 %s66, 1
    %p70 = scmp.eq.s32.totalorder %s11, 1
    %p71 = scmp.ne.s32.totalorder %s66, %s68
    %p72 = scmp.eq.s32.totalorder %s11, 0
    %p73 = por %p71, %p72
    %p74 = scmp.ne.s32.totalorder %s66, %s68
    %p75 = scmp.eq.s32.totalorder %s16, 1
    %p76 = por %p74, %p75
    %p77 = scmp.ne.s32.totalorder %s68, %s69
    %p78 = scmp.eq.s32.totalorder %s16, 0
    %p79 = por %p77, %p78
    %p80 = scmp.ne.s32.totalorder %s68, %s69
    %p81 = scmp.eq.s32.totalorder %s17, 1
    %p82 = por %p80, %p81
    %p84 = scmp.ne.s32.totalorder %s69, %s83
    %p85 = scmp.eq.s32.totalorder %s17, 0
    %p86 = por %p84, %p85
    %s87 = ssub.s32 %s11, %s18
    %p88 = scmp.eq.s32.totalorder %s87, 0
    %s90 = sadd.s32 %s89, 1
    %s91 = scalar_select %p88, %s89, %s90
    %p94 = pneg %p88
    %p95 = scmp.eq.s32.totalorder %s11, 1
    %p96 = por %p94, %p95
    %p97 = scmp.ne.s32.totalorder %s89, %s92
    %p98 = scmp.eq.s32.totalorder %s11, 0
    %p99 = por %p97, %p98
    %p100 = scmp.ne.s32.totalorder %s89, %s92
    %p101 = scmp.eq.s32.totalorder %s16, 1
    %p102 = por %p100, %p101
    %p103 = scmp.ne.s32.totalorder %s92, %s93
    %p104 = scmp.eq.s32.totalorder %s16, 0
    %p105 = por %p103, %p104
    %p106 = scmp.ne.s32.totalorder %s92, %s93
    %p107 = scmp.eq.s32.totalorder %s17, 1
    %p108 = por %p106, %p107
    %p110 = scmp.ne.s32.totalorder %s93, %s109
    %p111 = scmp.eq.s32.totalorder %s17, 0
    %p112 = por %p110, %p111
    %s113 = ssub.s32 %s11, %s18
    %p114 = scmp.eq.s32.totalorder %s113, 0
    %s116 = sadd.s32 %s115, 1
    %s117 = scalar_select %p114, %s115, %s116
    %p120 = pneg %p114
    %p121 = scmp.eq.s32.totalorder %s11, 1
    %p122 = por %p120, %p121
    %p123 = scmp.ne.s32.totalorder %s115, %s118
    %p124 = scmp.eq.s32.totalorder %s11, 0
    %p125 = por %p123, %p124
    %p126 = scmp.ne.s32.totalorder %s115, %s118
    %p127 = scmp.eq.s32.totalorder %s16, 1
    %p128 = por %p126, %p127
    %p129 = scmp.ne.s32.totalorder %s118, %s119
    %p130 = scmp.eq.s32.totalorder %s16, 0
    %p131 = por %p129, %p130
    %p132 = scmp.ne.s32.totalorder %s118, %s119
    %p133 = scmp.eq.s32.totalorder %s17, 1
    %p134 = por %p132, %p133
    %p136 = scmp.ne.s32.totalorder %s119, %s135
    %p137 = scmp.eq.s32.totalorder %s17, 0
    %p138 = por %p136, %p137
    %s139 = ssub.s32 %s11, %s18
    %p140 = scmp.eq.s32.totalorder %s139, 0
    %s142 = sadd.s32 %s141, 1
    %s143 = scalar_select %p140, %s141, %s142
    %p146 = pneg %p140
    %p147 = scmp.eq.s32.totalorder %s11, 1
    %p148 = por %p146, %p147
    %p149 = scmp.ne.s32.totalorder %s141, %s144
    %p150 = scmp.eq.s32.totalorder %s11, 0
    %p151 = por %p149, %p150
    %p152 = scmp.ne.s32.totalorder %s141, %s144
    %p153 = scmp.eq.s32.totalorder %s16, 1
    %p154 = por %p152, %p153
    %p155 = scmp.ne.s32.totalorder %s144, %s145
    %p156 = scmp.eq.s32.totalorder %s16, 0
    %p157 = por %p155, %p156
    %p158 = scmp.ne.s32.totalorder %s144, %s145
    %p159 = scmp.eq.s32.totalorder %s17, 1
    %p160 = por %p158, %p159
    %p162 = scmp.ne.s32.totalorder %s145, %s161
    %p163 = scmp.eq.s32.totalorder %s17, 0
    %p164 = por %p162, %p163
    %p165 = scmp.le.s32.totalorder 1, %s11
    %p166 = scmp.lt.s32.totalorder %s11, 3
    %p167 = pnand %p165, %p166
    %p168 = pneg %p167
    // Predicated region
    $region9: #{tpu_custom_call.1} parent=5 // pred_check
      _
    $region10: #{tpu_custom_call.1} parent=5 // pred_check_branch
      %170 = sbr.rel (%p167) target = $region12
    $region11: #{tpu_custom_call.1} parent=5 // pred_region
      %s171 = ssub.s32 %s11, 1
      // Predicated region
      $region13: #{tpu_custom_call.1} parent=11 // pred_check
        %p172 = pneg %p58
      $region14: #{tpu_custom_call.1} parent=11 // pred_check_branch
        %174 = sbr.rel (%p172) target = $region16
      $region15: #{tpu_custom_call.1} parent=11 // pred_region
        _
      $region16: #{tpu_custom_call.1} parent=11 // pred_fallthru
        _
      // Predicated region
      $region17: #{tpu_custom_call.1} parent=11 // pred_check
        %p175 = pneg %p79
      $region18: #{tpu_custom_call.1} parent=11 // pred_check_branch
        %177 = sbr.rel (%p175) target = $region20
      $region19: #{tpu_custom_call.1} parent=11 // pred_region
        _
      $region20: #{tpu_custom_call.1} parent=11 // pred_fallthru
        _
    $region12: #{tpu_custom_call.1} parent=5 // pred_fallthru
      _
    %p178 = scmp.lt.s32.totalorder %s11, 2
    // Predicated region
    $region21: #{tpu_custom_call.1} parent=5 // pred_check
      %p179 = pneg %p178
    $region22: #{tpu_custom_call.1} parent=5 // pred_check_branch
      %181 = sbr.rel (%p179) target = $region24
    $region23: #{tpu_custom_call.1} parent=5 // pred_region
      // Predicated region
      $region25: #{tpu_custom_call.1} parent=23 // pred_check
        %p182 = pneg %p31
      $region26: #{tpu_custom_call.1} parent=23 // pred_check_branch
        %184 = sbr.rel (%p182) target = $region28
      $region27: #{tpu_custom_call.1} parent=23 // pred_region
        %p185 = scmp.lt.s32.totalorder %s11, 1
        %s186 = scalar_select %p185, %s11, 1
        %s187 = smul.addr %s186, 2
        %s188 = smul.addr %s187, 8
        %s189 = scalar_lea.vmem %s0, %s188
      $region28: #{tpu_custom_call.1} parent=23 // pred_fallthru
        _
      // Predicated region
      $region29: #{tpu_custom_call.1} parent=23 // pred_check
        %p190 = pneg %p99
      $region30: #{tpu_custom_call.1} parent=23 // pred_check_branch
        %192 = sbr.rel (%p190) target = $region32
      $region31: #{tpu_custom_call.1} parent=23 // pred_region
        %p193 = scmp.lt.s32.totalorder %s11, 1
        %s194 = scalar_select %p193, %s11, 1
        %s195 = scalar_lea.vmem %s3, %s194
      $region32: #{tpu_custom_call.1} parent=23 // pred_fallthru
        _
      // Predicated region
      $region33: #{tpu_custom_call.1} parent=23 // pred_check
        %p196 = pneg %p125
      $region34: #{tpu_custom_call.1} parent=23 // pred_check_branch
        %198 = sbr.rel (%p196) target = $region36
      $region35: #{tpu_custom_call.1} parent=23 // pred_region
        %p199 = scmp.lt.s32.totalorder %s11, 1
        %s200 = scalar_select %p199, %s11, 1
        %s201 = smul.addr %s200, 3
        %s202 = smul.addr %s201, 8
        %s203 = scalar_lea.vmem %s4, %s202
      $region36: #{tpu_custom_call.1} parent=23 // pred_fallthru
        _
    $region24: #{tpu_custom_call.1} parent=5 // pred_fallthru
      _
    %p204 = scmp.le.s32.totalorder 1, %s11
    %p205 = scmp.lt.s32.totalorder %s11, 3
    %p206 = pnand %p204, %p205
    %p207 = pneg %p206
    // Predicated region
    $region37: #{tpu_custom_call.1} parent=5 // pred_check
      _
    $region38: #{tpu_custom_call.1} parent=5 // pred_check_branch
      %209 = sbr.rel (%p206) target = $region40
    $region39: #{tpu_custom_call.1} parent=5 // pred_region
      %s210 = ssub.s32 %s11, 1
      %p211 = scmp.lt.s32.totalorder %s16, 1
      %s212 = scalar_select %p211, %s16, 1
      %s213 = smul.addr %s212, 2
      %s214 = smul.addr %s213, 8
      %s215 = scalar_lea.vmem %s0, %s214
      %p216 = pneg %p37
      %p217 = pneg %p34
      %p218 = pneg %p58
      %p219 = pneg %p55
      %p220 = pneg %p79
      %p221 = pneg %p76
      %p222 = scmp.lt.s32.totalorder %s16, 1
      %s223 = scalar_select %p222, %s16, 1
      %s224 = scalar_lea.vmem %s3, %s223
      %p225 = pneg %p105
      %p226 = pneg %p102
      %p227 = scmp.lt.s32.totalorder %s16, 1
      %s228 = scalar_select %p227, %s16, 1
      %s229 = smul.addr %s228, 3
      %s230 = smul.addr %s229, 8
      %s231 = scalar_lea.vmem %s4, %s230
      %p232 = pneg %p131
      %p233 = pneg %p128
      %p234 = pneg %p157
      %p235 = pneg %p154
      %p236 = scmp.lt.s32.totalorder %s16, 1
      %s237 = scalar_select %p236, %s16, 1
      %s238 = smul.addr %s237, 3
      %s239 = smul.addr %s238, 8
      %s240 = scalar_lea.vmem %s5, %s239
      %p241 = scmp.lt.s32.totalorder %s16, 1
      %s242 = scalar_select %p241, %s16, 1
      %s243 = smul.addr %s242, 2
      %s244 = smul.addr %s243, 8
      %s245 = scalar_lea.vmem %s0, %s244
      %p246 = scmp.lt.s32.totalorder %s16, 1
      %s247 = scalar_select %p246, %s16, 1
      %s248 = scalar_lea.vmem %s3, %s247
      %p249 = scmp.lt.s32.totalorder %s16, 1
      %s250 = scalar_select %p249, %s16, 1
      %s251 = smul.addr %s250, 3
      %s252 = smul.addr %s251, 8
      %s253 = scalar_lea.vmem %s4, %s252
      %p254 = scmp.lt.s32.totalorder %s16, 1
      %s255 = scalar_select %p254, %s16, 1
      %s256 = smul.addr %s255, 3
      %s257 = smul.addr %s256, 8
      %s258 = scalar_lea.vmem %s5, %s257
      %v260 = vld [vmem:[%s245] sm:$0xff]
      %v261 = vld [vmem:[%s245 + $0x8] sm:$0xff]
      %v262 = vpack.c.bf16 %v261, %v260
      %v263 = vld [vmem:[%s1] sm:$0xf]
      %v264 = vld [vmem:[%s1 + $0x4] sm:$0xf]
      %v265 = vld [vmem:[%s1 + $0x8] sm:$0xf]
      %v266 = vld [vmem:[%s1 + $0xc] sm:$0xf]
      %v267 = vld [vmem:[%s1 + $0x10] sm:$0xf]
      %v268 = vld [vmem:[%s1 + $0x14] sm:$0xf]
      %v275 = vunpack.c.l.b16 %v263
      %v276 = vunpack.c.l.b16 %v264
      %v277 = vunpack.c.l.b16 %v265
      %v278 = vunpack.c.l.b16 %v266
      %v279 = vunpack.c.l.b16 %v267
      %v280 = vunpack.c.l.b16 %v268
      %v281 = vpack.c.b16 %v276, %v275
      %v282 = vpack.c.b16 %v278, %v277
      %v283 = vpack.c.b16 %v280, %v279
      %vm287 = vcmask 392192
      %v289 = vsel %vm287, %v262, 0
      %291 = vmatprep.subr.bf16.mxu0 0
      %292 = vmatpush1.bf16.msra.mxu0 %v281
      %293 = vmatprep.subr.bf16.mxu0 0
      %294 = vmatpush1.bf16.msra.mxu0 %v282
      %295 = vmatprep.subr.bf16.mxu0 0
      %296 = vmatpush1.bf16.msra.mxu0 %v283
      %297 = vmatprep.subr.bf16.mxu0 0
      %298 = vmatpush1.bf16.msra.mxu0 0
      %299 = vmatprep.subr.bf16.mxu0 0
      %300 = vmatpush1.bf16.msra.mxu0 0
      %301 = vmatprep.subr.bf16.mxu0 0
      %302 = vmatpush1.bf16.msra.mxu0 0
      %303 = vmatprep.subr.bf16.mxu0 0
      %304 = vmatpush1.bf16.msra.mxu0 0
      %305 = vmatprep.subr.bf16.mxu0 0
      %306 = vmatpush1.bf16.msra.mxu0 0
      %307 = vmatprep.subr.bf16.mxu0 0
      %308 = vmatpush1.bf16.msra.mxu0 0
      %309 = vmatprep.subr.bf16.mxu0 0
      %310 = vmatpush1.bf16.msra.mxu0 0
      %311 = vmatprep.subr.bf16.mxu0 0
      %312 = vmatpush1.bf16.msra.mxu0 0
      %313 = vmatprep.subr.bf16.mxu0 0
      %314 = vmatpush1.bf16.msra.mxu0 0
      %315 = vmatprep.subr.bf16.mxu0 0
      %316 = vmatpush1.bf16.msra.mxu0 0
      %317 = vmatprep.subr.bf16.mxu0 0
      %318 = vmatpush1.bf16.msra.mxu0 0
      %319 = vmatprep.subr.bf16.mxu0 0
      %320 = vmatpush1.bf16.msra.mxu0 0
      %321 = vmatprep.subr.bf16.mxu0 0
      %322 = vmatpush1.bf16.msra.mxu0 0
      %323 = vmatprep.mubr.bf16.mxu0 0
      %324 = vmatmul.mubr.bf16.gmra.mrb[0].mxu0 %v289
      %v325 = vpop.f32.mrb[0].mxu0
      %v326 = vadd.f32 0.0, %v325
      %v327 = vpop.f32.mrb[0].mxu0
      %v328 = vpop.f32.mrb[0].mxu0
      %v329 = vadd.f32 0.0, %v328
      %v330 = vpop.f32.mrb[0].mxu0
      %331 = vdwg.mxu0
      %v332 = vld [vmem:[%s248] sm:$0x1]
      %v333 = vld [vmem:[%s253] sm:$0x1]
      %v334 = vadd.f32 %v332, %v333
      %vm335 = vcmask 253952
      %336 = vst.msk [vmem:[%s258] sm:$0x1] %vm335, %v334
      %v337 = vld [vmem:[%s2] sm:$0x1]
      %v339 = vlaneseq
      %v340 = vshrl.u32 %v339, 7
      %v341 = vsub.s32 0, %v340
      %v342 = vrot.slane %v337, %v341
      %v344 = vadd.f32 %v326, %v342
      %v345 = vadd.f32 %v329, %v342
      %v346 = vld [vmem:[%s253 + $0x1] sm:$0xff]
      %v347 = vld [vmem:[%s253 + $0x9] sm:$0xff]
      %v348 = vadd.f32 %v344, %v346
      %v349 = vadd.f32 %v345, %v347
      %vm350 = vcmask 261120
      %351 = vst.msk [vmem:[%s258 + $0x1] sm:$0xff] %vm350, %v348
      %352 = vst.msk [vmem:[%s258 + $0x9] sm:$0xff] %vm350, %v349
      %p353 = scmp.lt.s32.totalorder %s16, 1
      %s354 = scalar_select %p353, %s16, 1
      %s355 = smul.addr %s354, 3
      %s356 = smul.addr %s355, 8
      %s357 = scalar_lea.vmem %s5, %s356
      // Predicated region
      $region41: #{tpu_custom_call.1} parent=39 // pred_check
        %p358 = pneg %p154
      $region42: #{tpu_custom_call.1} parent=39 // pred_check_branch
        %360 = sbr.rel (%p358) target = $region44
      $region43: #{tpu_custom_call.1} parent=39 // pred_region
        _
      $region44: #{tpu_custom_call.1} parent=39 // pred_fallthru
        _
    $region40: #{tpu_custom_call.1} parent=5 // pred_fallthru
      _
    %p361 = scmp.le.s32.totalorder 2, %s11
    // Predicated region
    $region45: #{tpu_custom_call.1} parent=5 // pred_check
      %p362 = pneg %p361
    $region46: #{tpu_custom_call.1} parent=5 // pred_check_branch
      %364 = sbr.rel (%p362) target = $region48
    $region47: #{tpu_custom_call.1} parent=5 // pred_region
      %s365 = ssub.s32 %s11, 2
      // Predicated region
      $region49: #{tpu_custom_call.1} parent=47 // pred_check
        %p366 = pneg %p160
      $region50: #{tpu_custom_call.1} parent=47 // pred_check_branch
        %368 = sbr.rel (%p366) target = $region52
      $region51: #{tpu_custom_call.1} parent=47 // pred_region
        %p369 = scmp.lt.s32.totalorder %s17, 1
        %s370 = scalar_select %p369, %s17, 1
        %s371 = smul.addr %s370, 3
        %s372 = smul.addr %s371, 8
        %s373 = scalar_lea.vmem %s5, %s372
      $region52: #{tpu_custom_call.1} parent=47 // pred_fallthru
        _
    $region48: #{tpu_custom_call.1} parent=5 // pred_fallthru
      _
  $region6: #{tpu_custom_call.1} parent=0 // loop_footer
    %s15 = sadd.s32 1, %s11
  $region7: #{tpu_custom_call.1} parent=0 // loop_footer_branch
    %10 = sbr.rel target = $region3
  $region8: #{tpu_custom_call.1} parent=0 // loop_exit
    _

</llo_original>
